<compile_context>
chip_gen: v7x
topology: tpu7x:2x2x1
jax: 0.10.0
libtpu: 0.0.40
codegen_flags: <defaults>
</compile_context>

<pallas_src>
import functools

import jax
import jax.numpy as jnp
from jax.experimental import pallas as pl
from jax.experimental.pallas import tpu as pltpu

LANE = 128
SUBLANE = 8
_V7X_VMEM_BYTES = 64 * 1024 * 1024        # smallest per-TC VMEM across v5e/v6e/v7x
_DEFAULT_SCOPED_VMEM = 32 * 1024 * 1024


def _round_up(x, m):
    return ((x + m - 1) // m) * m


def _cdiv(a, b):
    return -(-a // b)


# ---------------------------------------------------------------------------
# Kernel: the whole layer chain runs inside one pallas_call; intermediate
# activations never leave VMEM / vregs.
# ---------------------------------------------------------------------------
def _fused_mlp_kernel(*refs, n_layers):
    # refs = (x_ref, w0, b0, w1, b1, ..., w{L-1}, b{L-1}, o_ref)
    x_ref = refs[0]
    o_ref = refs[1 + 2 * n_layers]
    cdtype = x_ref.dtype                      # MXU operand dtype (f32 or bf16)

    h = x_ref[...]                            # (tm, in_dim) batch tile
    for li in range(n_layers):
        w_ref = refs[1 + 2 * li]
        b_ref = refs[2 + 2 * li]
        # MXU matmul with f32 accumulation; bias add / ReLU in f32 on the VPU.
        y = jnp.dot(h, w_ref[...], preferred_element_type=jnp.float32)
        y = y + b_ref[...]                    # (1, pout) broadcasts over rows
        if li < n_layers - 1:
            h = jnp.maximum(y, 0.0).astype(cdtype)
        else:
            o_ref[...] = y                    # true out_dim width (masked vst if < 128)


# ---------------------------------------------------------------------------
# One-time parameter preparation (hoisted out of the per-call forward path).
# ---------------------------------------------------------------------------
def prepare_params(params, *, compute_dtype=jnp.float32):
    """Zero-pad only the *internal* hidden feature dims to 128 lanes and cast the
    weights to the compute dtype once.  The input dim (rows of w0) and the output
    dim (cols of the last weight) are kept at their true widths so the kernel's
    HBM input/output traffic is not inflated.  Zero padding is exact: padded
    rows/cols and bias entries are 0, so padded lanes stay 0 through ReLU."""
    n_layers = len(params)
    dims = [params[0][0].shape[0]] + [w.shape[1] for (w, _) in params]
    pdims = list(dims)
    for i in range(1, len(dims) - 1):         # only hidden dims get lane-padded
        pdims[i] = _round_up(dims[i], LANE)

    flat = []
    for li, (w, b) in enumerate(params):
        pin, pout = pdims[li], pdims[li + 1]
        w = jnp.asarray(w, jnp.float32)
        b = jnp.asarray(b, jnp.float32)
        w_p = (jnp.zeros((pin, pout), compute_dtype)
               .at[: w.shape[0], : w.shape[1]].set(w.astype(compute_dtype)))
        b_p = jnp.zeros((1, pout), jnp.float32).at[0, : b.shape[0]].set(b)
        flat += [w_p, b_p]

    return dict(flat=tuple(flat), dims=tuple(dims), pdims=tuple(pdims),
                n_layers=n_layers, compute_dtype=compute_dtype)


def _choose_tm(n_rows, tm_max):
    rows = _round_up(max(int(n_rows), 1), SUBLANE)
    tm_max = max(SUBLANE, (int(tm_max) // SUBLANE) * SUBLANE)
    if rows <= tm_max:
        if rows >= 2 * SUBLANE:
            # Keep >= 2 grid steps so v7x's two TensorCores both get work.
            return _round_up(max(rows // 2, SUBLANE), SUBLANE)
        return rows
    steps = _cdiv(rows, tm_max)               # already >= 2 steps
    return _round_up(_cdiv(rows, steps), SUBLANE)


def mlp_forward_fused(x, prepared, *, tm_max=1024):
    """Fused MLP forward.  x: [N, in_dim]; prepared: output of prepare_params().
    Matches MLP.forward semantics: cast to f32, Linear/ReLU chain, reshape(-1)."""
    flat = prepared["flat"]
    dims = prepared["dims"]
    pdims = prepared["pdims"]
    n_layers = prepared["n_layers"]
    cdtype = prepared["compute_dtype"]

    N, in_dim = x.shape
    assert in_dim == dims[0], (in_dim, dims[0])
    out_dim = dims[-1]
    csize = jnp.dtype(cdtype).itemsize

    # ---- VMEM budget (conservatively against v7x's 64 MiB per TC) ----------
    # The default pipeline double-buffers every input/output block.
    w_bytes = sum(2 * a.size * a.dtype.itemsize for a in flat)
    row_bytes = (2 * in_dim * csize            # x tile (double-buffered)
                 + 2 * out_dim * 4             # out tile (double-buffered)
                 + 2 * max(pdims) * 4)         # f32 working activations headroom
    budget = int(0.7 * _V7X_VMEM_BYTES)
    tm_fit = max(SUBLANE,
                 ((budget - w_bytes) // max(row_bytes, 1)) // SUBLANE * SUBLANE)
    # TODO(synk): if w_bytes alone approaches the budget (large hidden dims), add a
    # K/contraction grid axis ("arbitrary") with an f32 VMEM accumulator instead of
    # keeping all weights resident; optionally single-buffer the constant-index
    # weight blocks (pl.Buffered(1)) and use fp8 weights on v7x.
    tm = _choose_tm(N, min(tm_max, tm_fit))
    n_pad = _round_up(N, tm)
    grid = (n_pad // tm,)

    vmem_limit = int(min(_V7X_VMEM_BYTES,
                         max(_DEFAULT_SCOPED_VMEM,
                             2 * (w_bytes + tm * row_bytes))))

    # ---- Input prep: single cast, pad batch rows only when needed ----------
    x_c = jnp.asarray(x, jnp.float32).astype(cdtype)   # module casts to f32 first
    if n_pad != N:
        x_c = jnp.zeros((n_pad, in_dim), cdtype).at[:N, :].set(x_c)

    # ---- BlockSpecs ---------------------------------------------------------
    # x / out: last dim equals the full array extent (legal even when < 128).
    in_specs = [pl.BlockSpec((tm, in_dim), lambda i: (i, 0))]
    for li in range(n_layers):
        pin, pout = pdims[li], pdims[li + 1]
        # Constant index_maps -> weights DMA'd into VMEM once, resident for all tiles.
        in_specs += [pl.BlockSpec((pin, pout), lambda i: (0, 0)),
                     pl.BlockSpec((1, pout), lambda i: (0, 0))]

    out_p = pl.pallas_call(
        functools.partial(_fused_mlp_kernel, n_layers=n_layers),
        out_shape=jax.ShapeDtypeStruct((n_pad, out_dim), jnp.float32),
        grid=grid,
        in_specs=in_specs,
        out_specs=pl.BlockSpec((tm, out_dim), lambda i: (i, 0)),
        compiler_params=pltpu.CompilerParams(
            dimension_semantics=("parallel",),   # shard batch tiles across TCs (v7x)
            vmem_limit_bytes=vmem_limit),
    )(x_c, *flat)

    if n_pad != N:
        out_p = out_p[:N, :]
    return out_p.reshape(-1)                     # flatten like MLP.forward


# ---------------------------------------------------------------------------
# Test harness
# ---------------------------------------------------------------------------
def init_mlp_params(key, in_dim, out_dim, hidden_list):
    """PyTorch-style init: U(-1/sqrt(fan_in), 1/sqrt(fan_in)).  Weights stored
    as [in_dim, out_dim] (pre-transposed for the kernel)."""
    dims = [in_dim] + list(hidden_list) + [out_dim]
    params = []
    for li in range(len(dims) - 1):
        fan_in, fan_out = dims[li], dims[li + 1]
        key, kw, kb = jax.random.split(key, 3)
        bound = 1.0 / (fan_in ** 0.5)
        w = jax.random.uniform(kw, (fan_in, fan_out), jnp.float32, -bound, bound)
        b = jax.random.uniform(kb, (fan_out,), jnp.float32, -bound, bound)
        params.append((w, b))
    return params


def mlp_reference(x, params):
    h = jnp.asarray(x, jnp.float32)
    for i, (w, b) in enumerate(params):
        h = jnp.dot(h, w, precision=jax.lax.Precision.HIGHEST) + b
        if i < len(params) - 1:
            h = jnp.maximum(h, 0.0)
    return h.reshape(-1)


if __name__ == "__main__":
    # Shapes consistent with MLP(in_dim, out_dim, hidden_list).
    in_dim, out_dim, hidden_list = 4, 3, [32, 32]
    batch = 256                                  # -> 2 batch tiles of 128 rows

    key = jax.random.PRNGKey(0)
    kx, kp = jax.random.split(key)
    x = jax.random.normal(kx, (batch, in_dim), dtype=jnp.float32)
    params = init_mlp_params(kp, in_dim, out_dim, hidden_list)

    ref = mlp_reference(x, params)

    # f32 path (tolerance covers MXU multi-pass vs XLA matmul precision diffs).
    prep_f32 = prepare_params(params, compute_dtype=jnp.float32)
    out_f32 = jax.block_until_ready(mlp_forward_fused(x, prep_f32))
    assert out_f32.shape == (batch * out_dim,)
    assert jnp.allclose(out_f32, ref, atol=3e-2, rtol=3e-2)

    # bf16 MXU-operand path with f32 accumulation (fast path on v6e/v7x).
    prep_bf16 = prepare_params(params, compute_dtype=jnp.bfloat16)
    out_bf16 = jax.block_until_ready(mlp_forward_fused(x, prep_bf16))
    assert out_bf16.shape == (batch * out_dim,)
    assert jnp.allclose(out_bf16, ref, atol=1e-1, rtol=1e-1)

    print("KERNEL_OK")
</pallas_src>

<mosaic_0001>
module attributes {stable_mosaic.version = 11 : i64} {
  func.func @_fused_mlp_kernel(%arg0: i32, %arg1: memref<128x4xf32, #tpu.memory_space<vmem>>, %arg2: memref<4x128xf32, #tpu.memory_space<vmem>>, %arg3: memref<1x128xf32, #tpu.memory_space<vmem>>, %arg4: memref<128x128xf32, #tpu.memory_space<vmem>>, %arg5: memref<1x128xf32, #tpu.memory_space<vmem>>, %arg6: memref<128x3xf32, #tpu.memory_space<vmem>>, %arg7: memref<1x3xf32, #tpu.memory_space<vmem>>, %arg8: memref<128x3xf32, #tpu.memory_space<vmem>>) attributes {dimension_semantics = [#tpu.dimension_semantics<parallel>], iteration_bounds = array<i64: 2>, scalar_prefetch = 0 : i64, scratch_operands = 0 : i64, tpu.core_type = #tpu.core_type<tc>, window_params = [{transform_indices = @transform_0, window_bounds = array<i64: 128, 4>}, {pipeline_mode = #tpu.pipeline_mode<synchronous>, transform_indices = @transform_1, window_bounds = array<i64: 4, 128>}, {pipeline_mode = #tpu.pipeline_mode<synchronous>, transform_indices = @transform_2, window_bounds = array<i64: 1, 128>}, {pipeline_mode = #tpu.pipeline_mode<synchronous>, transform_indices = @transform_3, window_bounds = array<i64: 128, 128>}, {pipeline_mode = #tpu.pipeline_mode<synchronous>, transform_indices = @transform_4, window_bounds = array<i64: 1, 128>}, {pipeline_mode = #tpu.pipeline_mode<synchronous>, transform_indices = @transform_5, window_bounds = array<i64: 128, 3>}, {pipeline_mode = #tpu.pipeline_mode<synchronous>, transform_indices = @transform_6, window_bounds = array<i64: 1, 3>}, {transform_indices = @transform_7, window_bounds = array<i64: 128, 3>}]} {
    %c0 = arith.constant 0 : index
    %c0_0 = arith.constant 0 : index
    %0 = vector.load %arg1[%c0, %c0_0] : memref<128x4xf32, #tpu.memory_space<vmem>>, vector<128x4xf32>
    %c0_1 = arith.constant 0 : index
    %c0_2 = arith.constant 0 : index
    %1 = vector.load %arg2[%c0_1, %c0_2] : memref<4x128xf32, #tpu.memory_space<vmem>>, vector<4x128xf32>
    %cst = arith.constant dense<0.000000e+00> : vector<128x128xf32>
    %2 = tpu.matmul %0, %1, %cst {dimension_numbers = #tpu.dot_dimension_numbers<[1], [0], [0], [1], [0, 0, 1, 1], [], []>} : vector<128x4xf32>, vector<4x128xf32>, vector<128x128xf32> -> vector<128x128xf32>
    %c0_3 = arith.constant 0 : index
    %c0_4 = arith.constant 0 : index
    %3 = vector.load %arg3[%c0_3, %c0_4] : memref<1x128xf32, #tpu.memory_space<vmem>>, vector<1x128xf32>
    %4 = vector.broadcast %3 : vector<1x128xf32> to vector<128x128xf32>
    %5 = arith.addf %2, %4 : vector<128x128xf32>
    %cst_5 = arith.constant 0.000000e+00 : f32
    %6 = vector.broadcast %cst_5 : f32 to vector<128x128xf32>
    %7 = arith.maximumf %5, %6 : vector<128x128xf32>
    %c0_6 = arith.constant 0 : index
    %c0_7 = arith.constant 0 : index
    %8 = vector.load %arg4[%c0_6, %c0_7] : memref<128x128xf32, #tpu.memory_space<vmem>>, vector<128x128xf32>
    %cst_8 = arith.constant dense<0.000000e+00> : vector<128x128xf32>
    %9 = tpu.matmul %7, %8, %cst_8 {dimension_numbers = #tpu.dot_dimension_numbers<[1], [0], [0], [1], [0, 0, 1, 1], [], []>} : vector<128x128xf32>, vector<128x128xf32>, vector<128x128xf32> -> vector<128x128xf32>
    %c0_9 = arith.constant 0 : index
    %c0_10 = arith.constant 0 : index
    %10 = vector.load %arg5[%c0_9, %c0_10] : memref<1x128xf32, #tpu.memory_space<vmem>>, vector<1x128xf32>
    %11 = vector.broadcast %10 : vector<1x128xf32> to vector<128x128xf32>
    %12 = arith.addf %9, %11 : vector<128x128xf32>
    %cst_11 = arith.constant 0.000000e+00 : f32
    %13 = vector.broadcast %cst_11 : f32 to vector<128x128xf32>
    %14 = arith.maximumf %12, %13 : vector<128x128xf32>
    %c0_12 = arith.constant 0 : index
    %c0_13 = arith.constant 0 : index
    %15 = vector.load %arg6[%c0_12, %c0_13] : memref<128x3xf32, #tpu.memory_space<vmem>>, vector<128x3xf32>
    %cst_14 = arith.constant dense<0.000000e+00> : vector<128x3xf32>
    %16 = tpu.matmul %14, %15, %cst_14 {dimension_numbers = #tpu.dot_dimension_numbers<[1], [0], [0], [1], [0, 0, 1, 1], [], []>} : vector<128x128xf32>, vector<128x3xf32>, vector<128x3xf32> -> vector<128x3xf32>
    %c0_15 = arith.constant 0 : index
    %c0_16 = arith.constant 0 : index
    %17 = vector.load %arg7[%c0_15, %c0_16] : memref<1x3xf32, #tpu.memory_space<vmem>>, vector<1x3xf32>
    %18 = vector.broadcast %17 : vector<1x3xf32> to vector<128x3xf32>
    %19 = arith.addf %16, %18 : vector<128x3xf32>
    %c0_17 = arith.constant 0 : index
    %c0_18 = arith.constant 0 : index
    %20 = vector.load %arg8[%c0_17, %c0_18] : memref<128x3xf32, #tpu.memory_space<vmem>>, vector<128x3xf32>
    tpu.vector_store %arg8[%c0_17, %c0_18], %19 {strides = array<i32>} : memref<128x3xf32, #tpu.memory_space<vmem>>, vector<128x3xf32>,
    return
  }
  func.func @transform_0(%arg0: i32) -> (i32, i32) {
    %c0_i32 = arith.constant 0 : i32
    %c0_i32_0 = arith.constant 0 : i32
    return %arg0, %c0_i32 : i32, i32
  }
  func.func @transform_1(%arg0: i32) -> (i32, i32) {
    %c0_i32 = arith.constant 0 : i32
    %c0_i32_0 = arith.constant 0 : i32
    %c0_i32_1 = arith.constant 0 : i32
    return %c0_i32, %c0_i32_0 : i32, i32
  }
  func.func @transform_2(%arg0: i32) -> (i32, i32) {
    %c0_i32 = arith.constant 0 : i32
    %c0_i32_0 = arith.constant 0 : i32
    %c0_i32_1 = arith.constant 0 : i32
    return %c0_i32, %c0_i32_0 : i32, i32
  }
  func.func @transform_3(%arg0: i32) -> (i32, i32) {
    %c0_i32 = arith.constant 0 : i32
    %c0_i32_0 = arith.constant 0 : i32
    %c0_i32_1 = arith.constant 0 : i32
    return %c0_i32, %c0_i32_0 : i32, i32
  }
  func.func @transform_4(%arg0: i32) -> (i32, i32) {
    %c0_i32 = arith.constant 0 : i32
    %c0_i32_0 = arith.constant 0 : i32
    %c0_i32_1 = arith.constant 0 : i32
    return %c0_i32, %c0_i32_0 : i32, i32
  }
  func.func @transform_5(%arg0: i32) -> (i32, i32) {
    %c0_i32 = arith.constant 0 : i32
    %c0_i32_0 = arith.constant 0 : i32
    %c0_i32_1 = arith.constant 0 : i32
    return %c0_i32, %c0_i32_0 : i32, i32
  }
  func.func @transform_6(%arg0: i32) -> (i32, i32) {
    %c0_i32 = arith.constant 0 : i32
    %c0_i32_0 = arith.constant 0 : i32
    %c0_i32_1 = arith.constant 0 : i32
    return %c0_i32, %c0_i32_0 : i32, i32
  }
  func.func @transform_7(%arg0: i32) -> (i32, i32) {
    %c0_i32 = arith.constant 0 : i32
    %c0_i32_0 = arith.constant 0 : i32
    return %arg0, %c0_i32 : i32, i32
  }
}

</mosaic_0001>

<llo_original>
// kernel: tpu_custom_call.1
$region0: #{tpu_custom_call.1}
  #allocation0 [shape = 'u32[]', space=smem, size = 0x4, offset = 0x4, fixed_abs, tag = 'smem constant byte address 0x4 - core index']
  #allocation1 [shape = 'u32[144,128]{1,0:T(1,128)}', space=vmem, size = 0x12000, scoped, tag = 'internal scratch']
  %s0 = inlined_call_operand.vmem [shape: f32[256,4], index: 0, kind: input, shape index: {}]
  %s1 = inlined_call_operand.vmem [shape: f32[4,128], index: 1, kind: input, shape index: {}]
  %s2 = inlined_call_operand.vmem [shape: f32[1,128], index: 2, kind: input, shape index: {}]
  %s3 = inlined_call_operand.vmem [shape: f32[128,128], index: 3, kind: input, shape index: {}]
  %s4 = inlined_call_operand.vmem [shape: f32[1,128], index: 4, kind: input, shape index: {}]
  %s5 = inlined_call_operand.vmem [shape: f32[128,3], index: 5, kind: input, shape index: {}]
  %s6 = inlined_call_operand.vmem [shape: f32[1,3], index: 6, kind: input, shape index: {}]
  %s7 = inlined_call_operand.vmem [shape: f32[256,3], index: 7, kind: output, shape index: {}]
  %s8 = sld [smem:[#allocation0]]
  $region61: #{tpu_custom_call.1} parent=0
    _
  %s10 = ssub.s32 1, %s8
  %s11 = scalar_select 0, %s10, %s8
  loop: start=0, step=1, limit=4
  $region2: #{tpu_custom_call.1} parent=0 // loop_pre_header
    _
  $region3: #{tpu_custom_call.1} parent=0 // loop_header
    %s13 = sphi 0, %s17
    %p14 = scmp.ge.s32.totalorder %s13, 4
    %s23 = sphi 0, %s25
    %s26 = sphi 0, %s23
    %s27 = sphi 0, %s26
    %s43 = sphi 0, %s27
    %s47 = sphi 0, %s47
    %s49 = sphi 0, %s47
    %s50 = sphi 0, %s49
    %s64 = sphi 0, %s50
    %s68 = sphi 0, %s68
    %s70 = sphi 0, %s68
    %s71 = sphi 0, %s70
    %s85 = sphi 0, %s71
    %s89 = sphi 0, %s89
    %s91 = sphi 0, %s89
    %s92 = sphi 0, %s91
    %s106 = sphi 0, %s92
    %s110 = sphi 0, %s110
    %s112 = sphi 0, %s110
    %s113 = sphi 0, %s112
    %s127 = sphi 0, %s113
    %s131 = sphi 0, %s131
    %s133 = sphi 0, %s131
    %s134 = sphi 0, %s133
    %s148 = sphi 0, %s134
    %s152 = sphi 0, %s152
    %s154 = sphi 0, %s152
    %s155 = sphi 0, %s154
    %s169 = sphi 0, %s155
    %s175 = sphi 0, %s177
    %s178 = sphi 0, %s175
    %s179 = sphi 0, %s178
    %s195 = sphi 0, %s179
  $region4: #{tpu_custom_call.1} parent=0 // loop_header_branch
    %16 = sbr.rel (%p14) target = $region8
  $region5: #{tpu_custom_call.1} parent=0 // loop_body
    %s18 = ssub.s32 %s13, 1
    %s19 = ssub.s32 %s13, 2
    %s20 = sadd.s32 %s13, 1
    %s21 = ssub.s32 %s13, %s20
    %p22 = scmp.eq.s32.totalorder %s21, 0
    %s24 = sadd.s32 %s23, 1
    %s25 = scalar_select %p22, %s23, %s24
    %p28 = pneg %p22
    %p29 = scmp.eq.s32.totalorder %s13, 1
    %p30 = por %p28, %p29
    %p31 = scmp.ne.s32.totalorder %s23, %s26
    %p32 = scmp.eq.s32.totalorder %s13, 0
    %p33 = por %p31, %p32
    %p34 = scmp.ne.s32.totalorder %s23, %s26
    %p35 = scmp.eq.s32.totalorder %s18, 1
    %p36 = por %p34, %p35
    %p37 = scmp.ne.s32.totalorder %s26, %s27
    %p38 = scmp.eq.s32.totalorder %s18, 0
    %p39 = por %p37, %p38
    %p40 = scmp.ne.s32.totalorder %s26, %s27
    %p41 = scmp.eq.s32.totalorder %s19, 1
    %p42 = por %p40, %p41
    %p44 = scmp.ne.s32.totalorder %s27, %s43
    %p45 = scmp.eq.s32.totalorder %s19, 0
    %p46 = por %p44, %p45
    %s48 = sadd.s32 %s47, 1
    %p51 = scmp.eq.s32.totalorder %s13, 1
    %p52 = scmp.ne.s32.totalorder %s47, %s49
    %p53 = scmp.eq.s32.totalorder %s13, 0
    %p54 = por %p52, %p53
    %p55 = scmp.ne.s32.totalorder %s47, %s49
    %p56 = scmp.eq.s32.totalorder %s18, 1
    %p57 = por %p55, %p56
    %p58 = scmp.ne.s32.totalorder %s49, %s50
    %p59 = scmp.eq.s32.totalorder %s18, 0
    %p60 = por %p58, %p59
    %p61 = scmp.ne.s32.totalorder %s49, %s50
    %p62 = scmp.eq.s32.totalorder %s19, 1
    %p63 = por %p61, %p62
    %p65 = scmp.ne.s32.totalorder %s50, %s64
    %p66 = scmp.eq.s32.totalorder %s19, 0
    %p67 = por %p65, %p66
    %s69 = sadd.s32 %s68, 1
    %p72 = scmp.eq.s32.totalorder %s13, 1
    %p73 = scmp.ne.s32.totalorder %s68, %s70
    %p74 = scmp.eq.s32.totalorder %s13, 0
    %p75 = por %p73, %p74
    %p76 = scmp.ne.s32.totalorder %s68, %s70
    %p77 = scmp.eq.s32.totalorder %s18, 1
    %p78 = por %p76, %p77
    %p79 = scmp.ne.s32.totalorder %s70, %s71
    %p80 = scmp.eq.s32.totalorder %s18, 0
    %p81 = por %p79, %p80
    %p82 = scmp.ne.s32.totalorder %s70, %s71
    %p83 = scmp.eq.s32.totalorder %s19, 1
    %p84 = por %p82, %p83
    %p86 = scmp.ne.s32.totalorder %s71, %s85
    %p87 = scmp.eq.s32.totalorder %s19, 0
    %p88 = por %p86, %p87
    %s90 = sadd.s32 %s89, 1
    %p93 = scmp.eq.s32.totalorder %s13, 1
    %p94 = scmp.ne.s32.totalorder %s89, %s91
    %p95 = scmp.eq.s32.totalorder %s13, 0
    %p96 = por %p94, %p95
    %p97 = scmp.ne.s32.totalorder %s89, %s91
    %p98 = scmp.eq.s32.totalorder %s18, 1
    %p99 = por %p97, %p98
    %p100 = scmp.ne.s32.totalorder %s91, %s92
    %p101 = scmp.eq.s32.totalorder %s18, 0
    %p102 = por %p100, %p101
    %p103 = scmp.ne.s32.totalorder %s91, %s92
    %p104 = scmp.eq.s32.totalorder %s19, 1
    %p105 = por %p103, %p104
    %p107 = scmp.ne.s32.totalorder %s92, %s106
    %p108 = scmp.eq.s32.totalorder %s19, 0
    %p109 = por %p107, %p108
    %s111 = sadd.s32 %s110, 1
    %p114 = scmp.eq.s32.totalorder %s13, 1
    %p115 = scmp.ne.s32.totalorder %s110, %s112
    %p116 = scmp.eq.s32.totalorder %s13, 0
    %p117 = por %p115, %p116
    %p118 = scmp.ne.s32.totalorder %s110, %s112
    %p119 = scmp.eq.s32.totalorder %s18, 1
    %p120 = por %p118, %p119
    %p121 = scmp.ne.s32.totalorder %s112, %s113
    %p122 = scmp.eq.s32.totalorder %s18, 0
    %p123 = por %p121, %p122
    %p124 = scmp.ne.s32.totalorder %s112, %s113
    %p125 = scmp.eq.s32.totalorder %s19, 1
    %p126 = por %p124, %p125
    %p128 = scmp.ne.s32.totalorder %s113, %s127
    %p129 = scmp.eq.s32.totalorder %s19, 0
    %p130 = por %p128, %p129
    %s132 = sadd.s32 %s131, 1
    %p135 = scmp.eq.s32.totalorder %s13, 1
    %p136 = scmp.ne.s32.totalorder %s131, %s133
    %p137 = scmp.eq.s32.totalorder %s13, 0
    %p138 = por %p136, %p137
    %p139 = scmp.ne.s32.totalorder %s131, %s133
    %p140 = scmp.eq.s32.totalorder %s18, 1
    %p141 = por %p139, %p140
    %p142 = scmp.ne.s32.totalorder %s133, %s134
    %p143 = scmp.eq.s32.totalorder %s18, 0
    %p144 = por %p142, %p143
    %p145 = scmp.ne.s32.totalorder %s133, %s134
    %p146 = scmp.eq.s32.totalorder %s19, 1
    %p147 = por %p145, %p146
    %p149 = scmp.ne.s32.totalorder %s134, %s148
    %p150 = scmp.eq.s32.totalorder %s19, 0
    %p151 = por %p149, %p150
    %s153 = sadd.s32 %s152, 1
    %p156 = scmp.eq.s32.totalorder %s13, 1
    %p157 = scmp.ne.s32.totalorder %s152, %s154
    %p158 = scmp.eq.s32.totalorder %s13, 0
    %p159 = por %p157, %p158
    %p160 = scmp.ne.s32.totalorder %s152, %s154
    %p161 = scmp.eq.s32.totalorder %s18, 1
    %p162 = por %p160, %p161
    %p163 = scmp.ne.s32.totalorder %s154, %s155
    %p164 = scmp.eq.s32.totalorder %s18, 0
    %p165 = por %p163, %p164
    %p166 = scmp.ne.s32.totalorder %s154, %s155
    %p167 = scmp.eq.s32.totalorder %s19, 1
    %p168 = por %p166, %p167
    %p170 = scmp.ne.s32.totalorder %s155, %s169
    %p171 = scmp.eq.s32.totalorder %s19, 0
    %p172 = por %p170, %p171
    %s173 = ssub.s32 %s13, %s20
    %p174 = scmp.eq.s32.totalorder %s173, 0
    %s176 = sadd.s32 %s175, 1
    %s177 = scalar_select %p174, %s175, %s176
    %p180 = pneg %p174
    %p181 = scmp.eq.s32.totalorder %s13, 1
    %p182 = por %p180, %p181
    %p183 = scmp.ne.s32.totalorder %s175, %s178
    %p184 = scmp.eq.s32.totalorder %s13, 0
    %p185 = por %p183, %p184
    %p186 = scmp.ne.s32.totalorder %s175, %s178
    %p187 = scmp.eq.s32.totalorder %s18, 1
    %p188 = por %p186, %p187
    %p189 = scmp.ne.s32.totalorder %s178, %s179
    %p190 = scmp.eq.s32.totalorder %s18, 0
    %p191 = por %p189, %p190
    %p192 = scmp.ne.s32.totalorder %s178, %s179
    %p193 = scmp.eq.s32.totalorder %s19, 1
    %p194 = por %p192, %p193
    %p196 = scmp.ne.s32.totalorder %s179, %s195
    %p197 = scmp.eq.s32.totalorder %s19, 0
    %p198 = por %p196, %p197
    %p199 = scmp.le.s32.totalorder 1, %s13
    %p200 = scmp.lt.s32.totalorder %s13, 3
    %p201 = pnand %p199, %p200
    %p202 = pneg %p201
    // Predicated region
    $region9: #{tpu_custom_call.1} parent=5 // pred_check
      _
    $region10: #{tpu_custom_call.1} parent=5 // pred_check_branch
      %204 = sbr.rel (%p201) target = $region12
    $region11: #{tpu_custom_call.1} parent=5 // pred_region
      %s205 = ssub.s32 %s13, 1
      // Predicated region
      $region13: #{tpu_custom_call.1} parent=11 // pred_check
        %p206 = pneg %p60
      $region14: #{tpu_custom_call.1} parent=11 // pred_check_branch
        %208 = sbr.rel (%p206) target = $region16
      $region15: #{tpu_custom_call.1} parent=11 // pred_region
        _
      $region16: #{tpu_custom_call.1} parent=11 // pred_fallthru
        _
      // Predicated region
      $region17: #{tpu_custom_call.1} parent=11 // pred_check
        %p209 = pneg %p81
      $region18: #{tpu_custom_call.1} parent=11 // pred_check_branch
        %211 = sbr.rel (%p209) target = $region20
      $region19: #{tpu_custom_call.1} parent=11 // pred_region
        _
      $region20: #{tpu_custom_call.1} parent=11 // pred_fallthru
        _
      // Predicated region
      $region21: #{tpu_custom_call.1} parent=11 // pred_check
        %p212 = pneg %p102
      $region22: #{tpu_custom_call.1} parent=11 // pred_check_branch
        %214 = sbr.rel (%p212) target = $region24
      $region23: #{tpu_custom_call.1} parent=11 // pred_region
        _
      $region24: #{tpu_custom_call.1} parent=11 // pred_fallthru
        _
      // Predicated region
      $region25: #{tpu_custom_call.1} parent=11 // pred_check
        %p215 = pneg %p123
      $region26: #{tpu_custom_call.1} parent=11 // pred_check_branch
        %217 = sbr.rel (%p215) target = $region28
      $region27: #{tpu_custom_call.1} parent=11 // pred_region
        _
      $region28: #{tpu_custom_call.1} parent=11 // pred_fallthru
        _
      // Predicated region
      $region29: #{tpu_custom_call.1} parent=11 // pred_check
        %p218 = pneg %p144
      $region30: #{tpu_custom_call.1} parent=11 // pred_check_branch
        %220 = sbr.rel (%p218) target = $region32
      $region31: #{tpu_custom_call.1} parent=11 // pred_region
        _
      $region32: #{tpu_custom_call.1} parent=11 // pred_fallthru
        _
      // Predicated region
      $region33: #{tpu_custom_call.1} parent=11 // pred_check
        %p221 = pneg %p165
      $region34: #{tpu_custom_call.1} parent=11 // pred_check_branch
        %223 = sbr.rel (%p221) target = $region36
      $region35: #{tpu_custom_call.1} parent=11 // pred_region
        _
      $region36: #{tpu_custom_call.1} parent=11 // pred_fallthru
        _
    $region12: #{tpu_custom_call.1} parent=5 // pred_fallthru
      _
    %p224 = scmp.lt.s32.totalorder %s13, 2
    // Predicated region
    $region37: #{tpu_custom_call.1} parent=5 // pred_check
      %p225 = pneg %p224
    $region38: #{tpu_custom_call.1} parent=5 // pred_check_branch
      %227 = sbr.rel (%p225) target = $region40
    $region39: #{tpu_custom_call.1} parent=5 // pred_region
      // Predicated region
      $region41: #{tpu_custom_call.1} parent=39 // pred_check
        %p228 = pneg %p33
      $region42: #{tpu_custom_call.1} parent=39 // pred_check_branch
        %230 = sbr.rel (%p228) target = $region44
      $region43: #{tpu_custom_call.1} parent=39 // pred_region
        %s231 = smul.u32 16, %s13
        %p232 = scmp.lt.s32.totalorder %s231, 31
        %s233 = scalar_select %p232, %s231, 31
        %s234 = smul.addr %s233, 8
        %s235 = scalar_lea.vmem %s0, %s234
        %s236 = smul.u32 16, %s13
      $region44: #{tpu_custom_call.1} parent=39 // pred_fallthru
        _
    $region40: #{tpu_custom_call.1} parent=5 // pred_fallthru
      _
    %p237 = scmp.le.s32.totalorder 1, %s13
    %p238 = scmp.lt.s32.totalorder %s13, 3
    %p239 = pnand %p237, %p238
    %p240 = pneg %p239
    // Predicated region
    $region45: #{tpu_custom_call.1} parent=5 // pred_check
      _
    $region46: #{tpu_custom_call.1} parent=5 // pred_check_branch
      %242 = sbr.rel (%p239) target = $region48
    $region47: #{tpu_custom_call.1} parent=5 // pred_region
      %s243 = ssub.s32 %s13, 1
      %s244 = smul.u32 16, %s18
      %p245 = scmp.lt.s32.totalorder %s244, 31
      %s246 = scalar_select %p245, %s244, 31
      %s247 = smul.addr %s246, 8
      %s248 = scalar_lea.vmem %s0, %s247
      %p249 = pneg %p39
      %p250 = pneg %p36
      %p251 = pneg %p60
      %p252 = pneg %p57
      %p253 = pneg %p81
      %p254 = pneg %p78
      %p255 = pneg %p102
      %p256 = pneg %p99
      %p257 = pneg %p123
      %p258 = pneg %p120
      %p259 = pneg %p144
      %p260 = pneg %p141
      %p261 = pneg %p165
      %p262 = pneg %p162
      %p263 = pneg %p191
      %p264 = pneg %p188
      %s265 = smul.u32 16, %s18
      %p266 = scmp.lt.s32.totalorder %s265, 31
      %s267 = scalar_select %p266, %s265, 31
      %s268 = smul.addr %s267, 8
      %s269 = scalar_lea.vmem %s7, %s268
      %s270 = smul.u32 16, %s18
      %p271 = scmp.lt.s32.totalorder %s270, 31
      %s272 = scalar_select %p271, %s270, 31
      %s273 = smul.addr %s272, 8
      %s274 = scalar_lea.vmem %s0, %s273
      %s275 = smul.u32 16, %s18
      %s276 = smul.u32 16, %s18
      %p277 = scmp.lt.s32.totalorder %s276, 31
      %s278 = scalar_select %p277, %s276, 31
      %s279 = smul.addr %s278, 8
      %s280 = scalar_lea.vmem %s7, %s279
      %s281 = smul.u32 16, %s18
      %v282 = vld [vmem:[%s274] sm:$0xff]
      %v283 = vld [vmem:[%s274 + $0x8] sm:$0xff]
      %v284 = vld [vmem:[%s274 + $0x10] sm:$0xff]
      %v285 = vld [vmem:[%s274 + $0x18] sm:$0xff]
      %v286 = vld [vmem:[%s274 + $0x20] sm:$0xff]
      %v287 = vld [vmem:[%s274 + $0x28] sm:$0xff]
      %v288 = vld [vmem:[%s274 + $0x30] sm:$0xff]
      %v289 = vld [vmem:[%s274 + $0x38] sm:$0xff]
      %v290 = vld [vmem:[%s274 + $0x40] sm:$0xff]
      %v291 = vld [vmem:[%s274 + $0x48] sm:$0xff]
      %v292 = vld [vmem:[%s274 + $0x50] sm:$0xff]
      %v293 = vld [vmem:[%s274 + $0x58] sm:$0xff]
      %v294 = vld [vmem:[%s274 + $0x60] sm:$0xff]
      %v295 = vld [vmem:[%s274 + $0x68] sm:$0xff]
      %v296 = vld [vmem:[%s274 + $0x70] sm:$0xff]
      %v297 = vld [vmem:[%s274 + $0x78] sm:$0xff]
      %v298 = vld [vmem:[%s1] sm:$0xf]
      %v299 = vld [vmem:[%s2] sm:$0x1]
      %v301 = vlaneseq
      %v302 = vshrl.u32 %v301, 7
      %v303 = vsub.s32 0, %v302
      %v304 = vrot.slane %v299, %v303
      %vm306 = vcmask 31744
      %v308 = vsel %vm306, %v282, 0
      %v311 = vsel %vm306, %v283, 0
      %v314 = vsel %vm306, %v284, 0
      %v317 = vsel %vm306, %v285, 0
      %v320 = vsel %vm306, %v286, 0
      %v323 = vsel %vm306, %v287, 0
      %v326 = vsel %vm306, %v288, 0
      %v329 = vsel %vm306, %v289, 0
      %v332 = vsel %vm306, %v290, 0
      %v335 = vsel %vm306, %v291, 0
      %v338 = vsel %vm306, %v292, 0
      %v341 = vsel %vm306, %v293, 0
      %v344 = vsel %vm306, %v294, 0
      %v347 = vsel %vm306, %v295, 0
      %v350 = vsel %vm306, %v296, 0
      %v353 = vsel %vm306, %v297, 0
      %vm355 = vcmask 1043456
      %v357 = vsel %vm355, %v298, 0
      %359 = vmatprep.subr.mxu0 0.0
      %360 = vmatpush1.msra.mxu0 %v357
      %361 = vmatprep.subr.mxu0 0.0
      %362 = vmatpush1.msra.mxu0 0.0
      %363 = vmatprep.subr.mxu0 0.0
      %364 = vmatpush1.msra.mxu0 0.0
      %365 = vmatprep.subr.mxu0 0.0
      %366 = vmatpush1.msra.mxu0 0.0
      %367 = vmatprep.subr.mxu0 0.0
      %368 = vmatpush1.msra.mxu0 0.0
      %369 = vmatprep.subr.mxu0 0.0
      %370 = vmatpush1.msra.mxu0 0.0
      %371 = vmatprep.subr.mxu0 0.0
      %372 = vmatpush1.msra.mxu0 0.0
      %373 = vmatprep.subr.mxu0 0.0
      %374 = vmatpush1.msra.mxu0 0.0
      %375 = vmatprep.subr.mxu0 0.0
      %376 = vmatpush1.msra.mxu0 0.0
      %377 = vmatprep.subr.mxu0 0.0
      %378 = vmatpush1.msra.mxu0 0.0
      %379 = vmatprep.subr.mxu0 0.0
      %380 = vmatpush1.msra.mxu0 0.0
      %381 = vmatprep.subr.mxu0 0.0
      %382 = vmatpush1.msra.mxu0 0.0
      %383 = vmatprep.subr.mxu0 0.0
      %384 = vmatpush1.msra.mxu0 0.0
      %385 = vmatprep.subr.mxu0 0.0
      %386 = vmatpush1.msra.mxu0 0.0
      %387 = vmatprep.subr.mxu0 0.0
      %388 = vmatpush1.msra.mxu0 0.0
      %389 = vmatprep.subr.mxu0 0.0
      %390 = vmatpush1.msra.mxu0 0.0
      %391 = vmatprep.subr.mxu0 0.0
      %392 = vmatpush1.msra.mxu0 0.0
      %393 = vmatprep.subr.mxu0 0.0
      %394 = vmatpush1.msra.mxu0 0.0
      %395 = vmatprep.subr.mxu0 0.0
      %396 = vmatpush1.msra.mxu0 0.0
      %397 = vmatprep.subr.mxu0 0.0
      %398 = vmatpush1.msra.mxu0 0.0
      %399 = vmatprep.subr.mxu0 0.0
      %400 = vmatpush1.msra.mxu0 0.0
      %401 = vmatprep.subr.mxu0 0.0
      %402 = vmatpush1.msra.mxu0 0.0
      %403 = vmatprep.subr.mxu0 0.0
      %404 = vmatpush1.msra.mxu0 0.0
      %405 = vmatprep.subr.mxu0 0.0
      %406 = vmatpush1.msra.mxu0 0.0
      %407 = vmatprep.subr.mxu0 0.0
      %408 = vmatpush1.msra.mxu0 0.0
      %409 = vmatprep.subr.mxu0 0.0
      %410 = vmatpush1.msra.mxu0 0.0
      %411 = vmatprep.subr.mxu0 0.0
      %412 = vmatpush1.msra.mxu0 0.0
      %413 = vmatprep.subr.mxu0 0.0
      %414 = vmatpush1.msra.mxu0 0.0
      %415 = vmatprep.subr.mxu0 0.0
      %416 = vmatpush1.msra.mxu0 0.0
      %417 = vmatprep.subr.mxu0 0.0
      %418 = vmatpush1.msra.mxu0 0.0
      %419 = vmatprep.subr.mxu0 0.0
      %420 = vmatpush1.msra.mxu0 0.0
      %421 = vmatprep.subr.mxu0 0.0
      %422 = vmatpush1.msra.mxu0 0.0
      %423 = vmatprep.mubr.f32.mxu0 0.0
      %424 = vmatmul.mubr.f32.gmra.mrb[0].mxu0 %v308
      %v425 = vpop.f32.mrb[0].mxu0
      %v426 = vadd.f32 %v304, %v425
      %v427 = vpop.f32.mrb[0].mxu0
      %428 = vmatprep.mubr.f32.mxu0 0.0
      %429 = vmatmul.mubr.f32.gmra.mrb[0].mxu0 %v311
      %v430 = vpop.f32.mrb[0].mxu0
      %v431 = vadd.f32 %v304, %v430
      %v432 = vpop.f32.mrb[0].mxu0
      %433 = vmatprep.mubr.f32.mxu0 0.0
      %434 = vmatmul.mubr.f32.gmra.mrb[0].mxu0 %v314
      %v435 = vpop.f32.mrb[0].mxu0
      %v436 = vadd.f32 %v304, %v435
      %v437 = vpop.f32.mrb[0].mxu0
      %438 = vmatprep.mubr.f32.mxu0 0.0
      %439 = vmatmul.mubr.f32.gmra.mrb[0].mxu0 %v317
      %v440 = vpop.f32.mrb[0].mxu0
      %v441 = vadd.f32 %v304, %v440
      %v442 = vpop.f32.mrb[0].mxu0
      %443 = vmatprep.mubr.f32.mxu0 0.0
      %444 = vmatmul.mubr.f32.gmra.mrb[0].mxu0 %v320
      %v445 = vpop.f32.mrb[0].mxu0
      %v446 = vadd.f32 %v304, %v445
      %v447 = vpop.f32.mrb[0].mxu0
      %448 = vmatprep.mubr.f32.mxu0 0.0
      %449 = vmatmul.mubr.f32.gmra.mrb[0].mxu0 %v323
      %v450 = vpop.f32.mrb[0].mxu0
      %v451 = vadd.f32 %v304, %v450
      %v452 = vpop.f32.mrb[0].mxu0
      %453 = vmatprep.mubr.f32.mxu0 0.0
      %454 = vmatmul.mubr.f32.gmra.mrb[0].mxu0 %v326
      %v455 = vpop.f32.mrb[0].mxu0
      %v456 = vadd.f32 %v304, %v455
      %v457 = vpop.f32.mrb[0].mxu0
      %458 = vmatprep.mubr.f32.mxu0 0.0
      %459 = vmatmul.mubr.f32.gmra.mrb[0].mxu0 %v329
      %v460 = vpop.f32.mrb[0].mxu0
      %v461 = vadd.f32 %v304, %v460
      %v462 = vpop.f32.mrb[0].mxu0
      %463 = vmatprep.mubr.f32.mxu0 0.0
      %464 = vmatmul.mubr.f32.gmra.mrb[0].mxu0 %v332
      %v465 = vpop.f32.mrb[0].mxu0
      %v466 = vadd.f32 %v304, %v465
      %v467 = vpop.f32.mrb[0].mxu0
      %468 = vmatprep.mubr.f32.mxu0 0.0
      %469 = vmatmul.mubr.f32.gmra.mrb[0].mxu0 %v335
      %v470 = vpop.f32.mrb[0].mxu0
      %v471 = vadd.f32 %v304, %v470
      %v472 = vpop.f32.mrb[0].mxu0
      %473 = vmatprep.mubr.f32.mxu0 0.0
      %474 = vmatmul.mubr.f32.gmra.mrb[0].mxu0 %v338
      %v475 = vpop.f32.mrb[0].mxu0
      %v476 = vadd.f32 %v304, %v475
      %v477 = vpop.f32.mrb[0].mxu0
      %478 = vmatprep.mubr.f32.mxu0 0.0
      %479 = vmatmul.mubr.f32.gmra.mrb[0].mxu0 %v341
      %v480 = vpop.f32.mrb[0].mxu0
      %v481 = vadd.f32 %v304, %v480
      %v482 = vpop.f32.mrb[0].mxu0
      %483 = vmatprep.mubr.f32.mxu0 0.0
      %484 = vmatmul.mubr.f32.gmra.mrb[0].mxu0 %v344
      %v485 = vpop.f32.mrb[0].mxu0
      %v486 = vadd.f32 %v304, %v485
      %v487 = vpop.f32.mrb[0].mxu0
      %488 = vmatprep.mubr.f32.mxu0 0.0
      %489 = vmatmul.mubr.f32.gmra.mrb[0].mxu0 %v347
      %v490 = vpop.f32.mrb[0].mxu0
      %v491 = vadd.f32 %v304, %v490
      %v492 = vpop.f32.mrb[0].mxu0
      %493 = vmatprep.mubr.f32.mxu0 0.0
      %494 = vmatmul.mubr.f32.gmra.mrb[0].mxu0 %v350
      %v495 = vpop.f32.mrb[0].mxu0
      %v496 = vadd.f32 %v304, %v495
      %v497 = vpop.f32.mrb[0].mxu0
      %498 = vmatprep.mubr.f32.mxu0 0.0
      %499 = vmatmul.mubr.f32.gmra.mrb[0].mxu0 %v353
      %v500 = vpop.f32.mrb[0].mxu0
      %v501 = vadd.f32 %v304, %v500
      %v502 = vpop.f32.mrb[0].mxu0
      %503 = vdwg.mxu0
      %v504 = vmax.f32 %v426, 0.0
      %v505 = vmax.f32 %v431, 0.0
      %v506 = vmax.f32 %v436, 0.0
      %v507 = vmax.f32 %v441, 0.0
      %v508 = vmax.f32 %v446, 0.0
      %v509 = vmax.f32 %v451, 0.0
      %v510 = vmax.f32 %v456, 0.0
      %v511 = vmax.f32 %v461, 0.0
      %v512 = vmax.f32 %v466, 0.0
      %v513 = vmax.f32 %v471, 0.0
      %v514 = vmax.f32 %v476, 0.0
      %v515 = vmax.f32 %v481, 0.0
      %v516 = vmax.f32 %v486, 0.0
      %v517 = vmax.f32 %v491, 0.0
      %v518 = vmax.f32 %v496, 0.0
      %v519 = vmax.f32 %v501, 0.0
      %v520 = vld [vmem:[%s3] sm:$0xff]
      %v521 = vld [vmem:[%s3 + $0x8] sm:$0xff]
      %v522 = vld [vmem:[%s3 + $0x10] sm:$0xff]
      %v523 = vld [vmem:[%s3 + $0x18] sm:$0xff]
      %v524 = vld [vmem:[%s3 + $0x20] sm:$0xff]
      %v525 = vld [vmem:[%s3 + $0x28] sm:$0xff]
      %v526 = vld [vmem:[%s3 + $0x30] sm:$0xff]
      %v527 = vld [vmem:[%s3 + $0x38] sm:$0xff]
      %v528 = vld [vmem:[%s3 + $0x40] sm:$0xff]
      %v529 = vld [vmem:[%s3 + $0x48] sm:$0xff]
      %v530 = vld [vmem:[%s3 + $0x50] sm:$0xff]
      %v531 = vld [vmem:[%s3 + $0x58] sm:$0xff]
      %v532 = vld [vmem:[%s3 + $0x60] sm:$0xff]
      %v533 = vld [vmem:[%s3 + $0x68] sm:$0xff]
      %v534 = vld [vmem:[%s3 + $0x70] sm:$0xff]
      %v535 = vld [vmem:[%s3 + $0x78] sm:$0xff]
      %v536 = vld [vmem:[%s4] sm:$0x1]
      %v538 = vlaneseq
      %v539 = vshrl.u32 %v538, 7
      %v540 = vsub.s32 0, %v539
      %v541 = vrot.slane %v536, %v540
      %543 = vmatprep.subr.mxu0 0.0
      %544 = vmatpush1.msra.mxu0 %v520
      %545 = vmatprep.subr.mxu0 0.0
      %546 = vmatpush1.msra.mxu0 %v521
      %547 = vmatprep.subr.mxu0 0.0
      %548 = vmatpush1.msra.mxu0 %v522
      %549 = vmatprep.subr.mxu0 0.0
      %550 = vmatpush1.msra.mxu0 %v523
      %551 = vmatprep.subr.mxu0 0.0
      %552 = vmatpush1.msra.mxu0 %v524
      %553 = vmatprep.subr.mxu0 0.0
      %554 = vmatpush1.msra.mxu0 %v525
      %555 = vmatprep.subr.mxu0 0.0
      %556 = vmatpush1.msra.mxu0 %v526
      %557 = vmatprep.subr.mxu0 0.0
      %558 = vmatpush1.msra.mxu0 %v527
      %559 = vmatprep.subr.mxu0 0.0
      %560 = vmatpush1.msra.mxu0 %v528
      %561 = vmatprep.subr.mxu0 0.0
      %562 = vmatpush1.msra.mxu0 %v529
      %563 = vmatprep.subr.mxu0 0.0
      %564 = vmatpush1.msra.mxu0 %v530
      %565 = vmatprep.subr.mxu0 0.0
      %566 = vmatpush1.msra.mxu0 %v531
      %567 = vmatprep.subr.mxu0 0.0
      %568 = vmatpush1.msra.mxu0 %v532
      %569 = vmatprep.subr.mxu0 0.0
      %570 = vmatpush1.msra.mxu0 %v533
      %571 = vmatprep.subr.mxu0 0.0
      %572 = vmatpush1.msra.mxu0 %v534
      %573 = vmatprep.subr.mxu0 0.0
      %574 = vmatpush1.msra.mxu0 %v535
      %575 = vmatprep.subr.mxu0 0.0
      %576 = vmatpush1.msra.mxu0 0.0
      %577 = vmatprep.subr.mxu0 0.0
      %578 = vmatpush1.msra.mxu0 0.0
      %579 = vmatprep.subr.mxu0 0.0
      %580 = vmatpush1.msra.mxu0 0.0
      %581 = vmatprep.subr.mxu0 0.0
      %582 = vmatpush1.msra.mxu0 0.0
      %583 = vmatprep.subr.mxu0 0.0
      %584 = vmatpush1.msra.mxu0 0.0
      %585 = vmatprep.subr.mxu0 0.0
      %586 = vmatpush1.msra.mxu0 0.0
      %587 = vmatprep.subr.mxu0 0.0
      %588 = vmatpush1.msra.mxu0 0.0
      %589 = vmatprep.subr.mxu0 0.0
      %590 = vmatpush1.msra.mxu0 0.0
      %591 = vmatprep.subr.mxu0 0.0
      %592 = vmatpush1.msra.mxu0 0.0
      %593 = vmatprep.subr.mxu0 0.0
      %594 = vmatpush1.msra.mxu0 0.0
      %595 = vmatprep.subr.mxu0 0.0
      %596 = vmatpush1.msra.mxu0 0.0
      %597 = vmatprep.subr.mxu0 0.0
      %598 = vmatpush1.msra.mxu0 0.0
      %599 = vmatprep.subr.mxu0 0.0
      %600 = vmatpush1.msra.mxu0 0.0
      %601 = vmatprep.subr.mxu0 0.0
      %602 = vmatpush1.msra.mxu0 0.0
      %603 = vmatprep.subr.mxu0 0.0
      %604 = vmatpush1.msra.mxu0 0.0
      %605 = vmatprep.subr.mxu0 0.0
      %606 = vmatpush1.msra.mxu0 0.0
      %607 = vmatprep.mubr.f32.mxu0 0.0
      %608 = vmatmul.mubr.f32.gmra.mrb[0].mxu0 %v504
      %v609 = vpop.f32.mrb[0].mxu0
      %v610 = vadd.f32 %v541, %v609
      %v611 = vpop.f32.mrb[0].mxu0
      %612 = vmatprep.mubr.f32.mxu0 0.0
      %613 = vmatmul.mubr.f32.gmra.mrb[0].mxu0 %v505
      %v614 = vpop.f32.mrb[0].mxu0
      %v615 = vadd.f32 %v541, %v614
      %v616 = vpop.f32.mrb[0].mxu0
      %617 = vmatprep.mubr.f32.mxu0 0.0
      %618 = vmatmul.mubr.f32.gmra.mrb[0].mxu0 %v506
      %v619 = vpop.f32.mrb[0].mxu0
      %v620 = vadd.f32 %v541, %v619
      %v621 = vpop.f32.mrb[0].mxu0
      %622 = vmatprep.mubr.f32.mxu0 0.0
      %623 = vmatmul.mubr.f32.gmra.mrb[0].mxu0 %v507
      %v624 = vpop.f32.mrb[0].mxu0
      %v625 = vadd.f32 %v541, %v624
      %v626 = vpop.f32.mrb[0].mxu0
      %627 = vmatprep.mubr.f32.mxu0 0.0
      %628 = vmatmul.mubr.f32.gmra.mrb[0].mxu0 %v508
      %v629 = vpop.f32.mrb[0].mxu0
      %v630 = vadd.f32 %v541, %v629
      %v631 = vpop.f32.mrb[0].mxu0
      %632 = vmatprep.mubr.f32.mxu0 0.0
      %633 = vmatmul.mubr.f32.gmra.mrb[0].mxu0 %v509
      %v634 = vpop.f32.mrb[0].mxu0
      %v635 = vadd.f32 %v541, %v634
      %v636 = vpop.f32.mrb[0].mxu0
      %637 = vmatprep.mubr.f32.mxu0 0.0
      %638 = vmatmul.mubr.f32.gmra.mrb[0].mxu0 %v510
      %v639 = vpop.f32.mrb[0].mxu0
      %v640 = vadd.f32 %v541, %v639
      %v641 = vpop.f32.mrb[0].mxu0
      %642 = vmatprep.mubr.f32.mxu0 0.0
      %643 = vmatmul.mubr.f32.gmra.mrb[0].mxu0 %v511
      %v644 = vpop.f32.mrb[0].mxu0
      %v645 = vadd.f32 %v541, %v644
      %v646 = vpop.f32.mrb[0].mxu0
      %647 = vmatprep.mubr.f32.mxu0 0.0
      %648 = vmatmul.mubr.f32.gmra.mrb[0].mxu0 %v512
      %v649 = vpop.f32.mrb[0].mxu0
      %v650 = vadd.f32 %v541, %v649
      %v651 = vpop.f32.mrb[0].mxu0
      %652 = vmatprep.mubr.f32.mxu0 0.0
      %653 = vmatmul.mubr.f32.gmra.mrb[0].mxu0 %v513
      %v654 = vpop.f32.mrb[0].mxu0
      %v655 = vadd.f32 %v541, %v654
      %v656 = vpop.f32.mrb[0].mxu0
      %657 = vmatprep.mubr.f32.mxu0 0.0
      %658 = vmatmul.mubr.f32.gmra.mrb[0].mxu0 %v514
      %v659 = vpop.f32.mrb[0].mxu0
      %v660 = vadd.f32 %v541, %v659
      %v661 = vpop.f32.mrb[0].mxu0
      %662 = vmatprep.mubr.f32.mxu0 0.0
      %663 = vmatmul.mubr.f32.gmra.mrb[0].mxu0 %v515
      %v664 = vpop.f32.mrb[0].mxu0
      %v665 = vadd.f32 %v541, %v664
      %v666 = vpop.f32.mrb[0].mxu0
      %667 = vmatprep.mubr.f32.mxu0 0.0
      %668 = vmatmul.mubr.f32.gmra.mrb[0].mxu0 %v516
      %v669 = vpop.f32.mrb[0].mxu0
      %v670 = vadd.f32 %v541, %v669
      %v671 = vpop.f32.mrb[0].mxu0
      %672 = vmatprep.mubr.f32.mxu0 0.0
      %673 = vmatmul.mubr.f32.gmra.mrb[0].mxu0 %v517
      %v674 = vpop.f32.mrb[0].mxu0
      %v675 = vadd.f32 %v541, %v674
      %v676 = vpop.f32.mrb[0].mxu0
      %677 = vmatprep.mubr.f32.mxu0 0.0
      %678 = vmatmul.mubr.f32.gmra.mrb[0].mxu0 %v518
      %v679 = vpop.f32.mrb[0].mxu0
      %v680 = vadd.f32 %v541, %v679
      %v681 = vpop.f32.mrb[0].mxu0
      %682 = vmatprep.mubr.f32.mxu0 0.0
      %683 = vmatmul.mubr.f32.gmra.mrb[0].mxu0 %v519
      %v684 = vpop.f32.mrb[0].mxu0
      %v685 = vadd.f32 %v541, %v684
      %v686 = vpop.f32.mrb[0].mxu0
      %687 = vdwg.mxu0
      %v688 = vmax.f32 %v610, 0.0
      %v689 = vmax.f32 %v615, 0.0
      %v690 = vmax.f32 %v620, 0.0
      %v691 = vmax.f32 %v625, 0.0
      %v692 = vmax.f32 %v630, 0.0
      %v693 = vmax.f32 %v635, 0.0
      %v694 = vmax.f32 %v640, 0.0
      %v695 = vmax.f32 %v645, 0.0
      %v696 = vmax.f32 %v650, 0.0
      %v697 = vmax.f32 %v655, 0.0
      %v698 = vmax.f32 %v660, 0.0
      %v699 = vmax.f32 %v665, 0.0
      %v700 = vmax.f32 %v670, 0.0
      %v701 = vmax.f32 %v675, 0.0
      %v702 = vmax.f32 %v680, 0.0
      %v703 = vmax.f32 %v685, 0.0
      %v704 = vld [vmem:[%s5] sm:$0xff]
      %v705 = vld [vmem:[%s5 + $0x8] sm:$0xff]
      %v706 = vld [vmem:[%s5 + $0x10] sm:$0xff]
      %v707 = vld [vmem:[%s5 + $0x18] sm:$0xff]
      %v708 = vld [vmem:[%s5 + $0x20] sm:$0xff]
      %v709 = vld [vmem:[%s5 + $0x28] sm:$0xff]
      %v710 = vld [vmem:[%s5 + $0x30] sm:$0xff]
      %v711 = vld [vmem:[%s5 + $0x38] sm:$0xff]
      %v712 = vld [vmem:[%s5 + $0x40] sm:$0xff]
      %v713 = vld [vmem:[%s5 + $0x48] sm:$0xff]
      %v714 = vld [vmem:[%s5 + $0x50] sm:$0xff]
      %v715 = vld [vmem:[%s5 + $0x58] sm:$0xff]
      %v716 = vld [vmem:[%s5 + $0x60] sm:$0xff]
      %v717 = vld [vmem:[%s5 + $0x68] sm:$0xff]
      %v718 = vld [vmem:[%s5 + $0x70] sm:$0xff]
      %v719 = vld [vmem:[%s5 + $0x78] sm:$0xff]
      %v720 = vld [vmem:[%s6] sm:$0x1]
      %v722 = vlaneseq
      %v723 = vshrl.u32 %v722, 7
      %v724 = vsub.s32 0, %v723
      %v725 = vrot.slane %v720, %v724
      %727 = vmatprep.subr.mxu0 0.0
      %728 = vmatpush1.msra.mxu0 %v704
      %729 = vmatprep.subr.mxu0 0.0
      %730 = vmatpush1.msra.mxu0 %v705
      %731 = vmatprep.subr.mxu0 0.0
      %732 = vmatpush1.msra.mxu0 %v706
      %733 = vmatprep.subr.mxu0 0.0
      %734 = vmatpush1.msra.mxu0 %v707
      %735 = vmatprep.subr.mxu0 0.0
      %736 = vmatpush1.msra.mxu0 %v708
      %737 = vmatprep.subr.mxu0 0.0
      %738 = vmatpush1.msra.mxu0 %v709
      %739 = vmatprep.subr.mxu0 0.0
      %740 = vmatpush1.msra.mxu0 %v710
      %741 = vmatprep.subr.mxu0 0.0
      %742 = vmatpush1.msra.mxu0 %v711
      %743 = vmatprep.subr.mxu0 0.0
      %744 = vmatpush1.msra.mxu0 %v712
      %745 = vmatprep.subr.mxu0 0.0
      %746 = vmatpush1.msra.mxu0 %v713
      %747 = vmatprep.subr.mxu0 0.0
      %748 = vmatpush1.msra.mxu0 %v714
      %749 = vmatprep.subr.mxu0 0.0
      %750 = vmatpush1.msra.mxu0 %v715
      %751 = vmatprep.subr.mxu0 0.0
      %752 = vmatpush1.msra.mxu0 %v716
      %753 = vmatprep.subr.mxu0 0.0
      %754 = vmatpush1.msra.mxu0 %v717
      %755 = vmatprep.subr.mxu0 0.0
      %756 = vmatpush1.msra.mxu0 %v718
      %757 = vmatprep.subr.mxu0 0.0
      %758 = vmatpush1.msra.mxu0 %v719
      %759 = vmatprep.subr.mxu0 0.0
      %760 = vmatpush1.msra.mxu0 0.0
      %761 = vmatprep.subr.mxu0 0.0
      %762 = vmatpush1.msra.mxu0 0.0
      %763 = vmatprep.subr.mxu0 0.0
      %764 = vmatpush1.msra.mxu0 0.0
      %765 = vmatprep.subr.mxu0 0.0
      %766 = vmatpush1.msra.mxu0 0.0
      %767 = vmatprep.subr.mxu0 0.0
      %768 = vmatpush1.msra.mxu0 0.0
      %769 = vmatprep.subr.mxu0 0.0
      %770 = vmatpush1.msra.mxu0 0.0
      %771 = vmatprep.subr.mxu0 0.0
      %772 = vmatpush1.msra.mxu0 0.0
      %773 = vmatprep.subr.mxu0 0.0
      %774 = vmatpush1.msra.mxu0 0.0
      %775 = vmatprep.subr.mxu0 0.0
      %776 = vmatpush1.msra.mxu0 0.0
      %777 = vmatprep.subr.mxu0 0.0
      %778 = vmatpush1.msra.mxu0 0.0
      %779 = vmatprep.subr.mxu0 0.0
      %780 = vmatpush1.msra.mxu0 0.0
      %781 = vmatprep.subr.mxu0 0.0
      %782 = vmatpush1.msra.mxu0 0.0
      %783 = vmatprep.subr.mxu0 0.0
      %784 = vmatpush1.msra.mxu0 0.0
      %785 = vmatprep.subr.mxu0 0.0
      %786 = vmatpush1.msra.mxu0 0.0
      %787 = vmatprep.subr.mxu0 0.0
      %788 = vmatpush1.msra.mxu0 0.0
      %789 = vmatprep.subr.mxu0 0.0
      %790 = vmatpush1.msra.mxu0 0.0
      %791 = vmatprep.mubr.f32.mxu0 0.0
      %792 = vmatmul.mubr.f32.gmra.mrb[0].mxu0 %v688
      %v793 = vpop.f32.mrb[0].mxu0
      %v794 = vadd.f32 %v725, %v793
      %v795 = vpop.f32.mrb[0].mxu0
      %796 = vmatprep.mubr.f32.mxu0 0.0
      %797 = vmatmul.mubr.f32.gmra.mrb[0].mxu0 %v689
      %v798 = vpop.f32.mrb[0].mxu0
      %v799 = vadd.f32 %v725, %v798
      %v800 = vpop.f32.mrb[0].mxu0
      %801 = vmatprep.mubr.f32.mxu0 0.0
      %802 = vmatmul.mubr.f32.gmra.mrb[0].mxu0 %v690
      %v803 = vpop.f32.mrb[0].mxu0
      %v804 = vadd.f32 %v725, %v803
      %v805 = vpop.f32.mrb[0].mxu0
      %806 = vmatprep.mubr.f32.mxu0 0.0
      %807 = vmatmul.mubr.f32.gmra.mrb[0].mxu0 %v691
      %v808 = vpop.f32.mrb[0].mxu0
      %v809 = vadd.f32 %v725, %v808
      %v810 = vpop.f32.mrb[0].mxu0
      %811 = vmatprep.mubr.f32.mxu0 0.0
      %812 = vmatmul.mubr.f32.gmra.mrb[0].mxu0 %v692
      %v813 = vpop.f32.mrb[0].mxu0
      %v814 = vadd.f32 %v725, %v813
      %v815 = vpop.f32.mrb[0].mxu0
      %816 = vmatprep.mubr.f32.mxu0 0.0
      %817 = vmatmul.mubr.f32.gmra.mrb[0].mxu0 %v693
      %v818 = vpop.f32.mrb[0].mxu0
      %v819 = vadd.f32 %v725, %v818
      %v820 = vpop.f32.mrb[0].mxu0
      %821 = vmatprep.mubr.f32.mxu0 0.0
      %822 = vmatmul.mubr.f32.gmra.mrb[0].mxu0 %v694
      %v823 = vpop.f32.mrb[0].mxu0
      %v824 = vadd.f32 %v725, %v823
      %v825 = vpop.f32.mrb[0].mxu0
      %826 = vmatprep.mubr.f32.mxu0 0.0
      %827 = vmatmul.mubr.f32.gmra.mrb[0].mxu0 %v695
      %v828 = vpop.f32.mrb[0].mxu0
      %v829 = vadd.f32 %v725, %v828
      %v830 = vpop.f32.mrb[0].mxu0
      %831 = vmatprep.mubr.f32.mxu0 0.0
      %832 = vmatmul.mubr.f32.gmra.mrb[0].mxu0 %v696
      %v833 = vpop.f32.mrb[0].mxu0
      %v834 = vadd.f32 %v725, %v833
      %v835 = vpop.f32.mrb[0].mxu0
      %836 = vmatprep.mubr.f32.mxu0 0.0
      %837 = vmatmul.mubr.f32.gmra.mrb[0].mxu0 %v697
      %v838 = vpop.f32.mrb[0].mxu0
      %v839 = vadd.f32 %v725, %v838
      %v840 = vpop.f32.mrb[0].mxu0
      %841 = vmatprep.mubr.f32.mxu0 0.0
      %842 = vmatmul.mubr.f32.gmra.mrb[0].mxu0 %v698
      %v843 = vpop.f32.mrb[0].mxu0
      %v844 = vadd.f32 %v725, %v843
      %v845 = vpop.f32.mrb[0].mxu0
      %846 = vmatprep.mubr.f32.mxu0 0.0
      %847 = vmatmul.mubr.f32.gmra.mrb[0].mxu0 %v699
      %v848 = vpop.f32.mrb[0].mxu0
      %v849 = vadd.f32 %v725, %v848
      %v850 = vpop.f32.mrb[0].mxu0
      %851 = vmatprep.mubr.f32.mxu0 0.0
      %852 = vmatmul.mubr.f32.gmra.mrb[0].mxu0 %v700
      %v853 = vpop.f32.mrb[0].mxu0
      %v854 = vadd.f32 %v725, %v853
      %v855 = vpop.f32.mrb[0].mxu0
      %856 = vmatprep.mubr.f32.mxu0 0.0
      %857 = vmatmul.mubr.f32.gmra.mrb[0].mxu0 %v701
      %v858 = vpop.f32.mrb[0].mxu0
      %v859 = vadd.f32 %v725, %v858
      %v860 = vpop.f32.mrb[0].mxu0
      %861 = vmatprep.mubr.f32.mxu0 0.0
      %862 = vmatmul.mubr.f32.gmra.mrb[0].mxu0 %v702
      %v863 = vpop.f32.mrb[0].mxu0
      %v864 = vadd.f32 %v725, %v863
      %v865 = vpop.f32.mrb[0].mxu0
      %866 = vmatprep.mubr.f32.mxu0 0.0
      %867 = vmatmul.mubr.f32.gmra.mrb[0].mxu0 %v703
      %v868 = vpop.f32.mrb[0].mxu0
      %v869 = vadd.f32 %v725, %v868
      %v870 = vpop.f32.mrb[0].mxu0
      %871 = vdwg.mxu0
      %vm872 = vcmask 23552
      %873 = vst.msk [vmem:[%s280] sm:$0xff] %vm872, %v794
      %874 = vst.msk [vmem:[%s280 + $0x8] sm:$0xff] %vm872, %v799
      %875 = vst.msk [vmem:[%s280 + $0x10] sm:$0xff] %vm872, %v804
      %876 = vst.msk [vmem:[%s280 + $0x18] sm:$0xff] %vm872, %v809
      %877 = vst.msk [vmem:[%s280 + $0x20] sm:$0xff] %vm872, %v814
      %878 = vst.msk [vmem:[%s280 + $0x28] sm:$0xff] %vm872, %v819
      %879 = vst.msk [vmem:[%s280 + $0x30] sm:$0xff] %vm872, %v824
      %880 = vst.msk [vmem:[%s280 + $0x38] sm:$0xff] %vm872, %v829
      %881 = vst.msk [vmem:[%s280 + $0x40] sm:$0xff] %vm872, %v834
      %882 = vst.msk [vmem:[%s280 + $0x48] sm:$0xff] %vm872, %v839
      %883 = vst.msk [vmem:[%s280 + $0x50] sm:$0xff] %vm872, %v844
      %884 = vst.msk [vmem:[%s280 + $0x58] sm:$0xff] %vm872, %v849
      %885 = vst.msk [vmem:[%s280 + $0x60] sm:$0xff] %vm872, %v854
      %886 = vst.msk [vmem:[%s280 + $0x68] sm:$0xff] %vm872, %v859
      %887 = vst.msk [vmem:[%s280 + $0x70] sm:$0xff] %vm872, %v864
      %888 = vst.msk [vmem:[%s280 + $0x78] sm:$0xff] %vm872, %v869
      %s889 = smul.u32 16, %s18
      %p890 = scmp.lt.s32.totalorder %s889, 31
      %s891 = scalar_select %p890, %s889, 31
      %s892 = smul.addr %s891, 8
      %s893 = scalar_lea.vmem %s7, %s892
      // Predicated region
      $region49: #{tpu_custom_call.1} parent=47 // pred_check
        %p894 = pneg %p188
      $region50: #{tpu_custom_call.1} parent=47 // pred_check_branch
        %896 = sbr.rel (%p894) target = $region52
      $region51: #{tpu_custom_call.1} parent=47 // pred_region
        %s897 = smul.u32 16, %s18
      $region52: #{tpu_custom_call.1} parent=47 // pred_fallthru
        _
    $region48: #{tpu_custom_call.1} parent=5 // pred_fallthru
      _
    %p898 = scmp.le.s32.totalorder 2, %s13
    // Predicated region
    $region53: #{tpu_custom_call.1} parent=5 // pred_check
      %p899 = pneg %p898
    $region54: #{tpu_custom_call.1} parent=5 // pred_check_branch
      %901 = sbr.rel (%p899) target = $region56
    $region55: #{tpu_custom_call.1} parent=5 // pred_region
      %s902 = ssub.s32 %s13, 2
      // Predicated region
      $region57: #{tpu_custom_call.1} parent=55 // pred_check
        %p903 = pneg %p194
      $region58: #{tpu_custom_call.1} parent=55 // pred_check_branch
        %905 = sbr.rel (%p903) target = $region60
      $region59: #{tpu_custom_call.1} parent=55 // pred_region
        %s906 = smul.u32 16, %s19
        %p907 = scmp.lt.s32.totalorder %s906, 31
        %s908 = scalar_select %p907, %s906, 31
        %s909 = smul.addr %s908, 8
        %s910 = scalar_lea.vmem %s7, %s909
      $region60: #{tpu_custom_call.1} parent=55 // pred_fallthru
        _
    $region56: #{tpu_custom_call.1} parent=5 // pred_fallthru
      _
  $region6: #{tpu_custom_call.1} parent=0 // loop_footer
    %s17 = sadd.s32 1, %s13
  $region7: #{tpu_custom_call.1} parent=0 // loop_footer_branch
    %12 = sbr.rel target = $region3
  $region8: #{tpu_custom_call.1} parent=0 // loop_exit
    _

</llo_original>
